<compile_context>
chip_gen: v6e
topology: v6e:2x2x1
jax: 0.10.0
libtpu: 0.0.40
codegen_flags: <defaults>
</compile_context>

<pallas_src>
import jax
import jax.numpy as jnp
from jax.experimental import pallas as pl
from jax.experimental.pallas import tpu as pltpu

_LANE = 128


def _round_up(x, m):
    return (x + m - 1) // m * m


def _mlp_critic_iou_kernel(xcat_ref, w1_ref, b1_ref, w2_ref, b2_ref, out_ref):
    # fc1: bf16 MXU operands, f32 accumulation; bias + LeakyReLU(0.2) in f32.
    h = jnp.dot(xcat_ref[...], w1_ref[...], preferred_element_type=jnp.float32)
    h = h + b1_ref[...]
    h = jnp.where(h > 0, h, 0.2 * h)
    # fc2: bf16 MXU operands, f32 accumulation; bias in f32.
    o = jnp.dot(h.astype(jnp.bfloat16), w2_ref[...],
                preferred_element_type=jnp.float32)
    out_ref[...] = (o + b2_ref[...]).astype(out_ref.dtype)


def mlp_critic_iou_forward(x, att, iou, params, *, tb=None):
    """x: (B, resSize), att: (B, attSize), iou: (B, iouSize) -> (B, 1)."""
    B = x.shape[0]
    res, na, ni = x.shape[1], att.shape[1], iou.shape[1]
    K = res + na + ni

    w1, b1, w2, b2 = params["w1"], params["b1"], params["w2"], params["b2"]
    ndh = w1.shape[1]
    assert w1.shape == (K, ndh)
    assert w2.shape == (ndh, 1)

    # Lane-pad feature dims; tile the batch (multiple of 16 for bf16 sublanes).
    Kp = _round_up(K, _LANE)
    Hp = _round_up(ndh, _LANE)
    OUTP = _LANE
    if tb is None:
        tb = min(256, _round_up(B, 16))
    tb = _round_up(tb, 16)
    Bp = _round_up(B, tb)

    # Fold the concat in the wrapper; zero-pad and cast MXU operands to bf16.
    xcat = jnp.concatenate((x, att, iou), axis=1)
    xcat = jnp.pad(xcat, ((0, Bp - B), (0, Kp - K))).astype(jnp.bfloat16)
    w1p = jnp.pad(w1, ((0, Kp - K), (0, Hp - ndh))).astype(jnp.bfloat16)
    b1p = jnp.pad(b1.reshape(1, -1), ((0, 0), (0, Hp - ndh))).astype(jnp.float32)
    w2p = jnp.pad(w2, ((0, Hp - ndh), (0, OUTP - 1))).astype(jnp.bfloat16)
    b2p = jnp.pad(b2.reshape(1, -1), ((0, 0), (0, OUTP - 1))).astype(jnp.float32)

    grid = (Bp // tb,)
    out = pl.pallas_call(
        _mlp_critic_iou_kernel,
        out_shape=jax.ShapeDtypeStruct((Bp, OUTP), jnp.float32),
        grid_spec=pltpu.PrefetchScalarGridSpec(
            num_scalar_prefetch=0,
            grid=grid,
            in_specs=[
                # streamed activations: new batch tile per grid step
                pl.BlockSpec((tb, Kp), lambda i: (i, 0)),
                # weights / biases: constant block index -> VMEM-resident
                pl.BlockSpec((Kp, Hp), lambda i: (0, 0)),
                pl.BlockSpec((1, Hp), lambda i: (0, 0)),
                pl.BlockSpec((Hp, OUTP), lambda i: (0, 0)),
                pl.BlockSpec((1, OUTP), lambda i: (0, 0)),
            ],
            out_specs=pl.BlockSpec((tb, OUTP), lambda i: (i, 0)),
        ),
        compiler_params=pltpu.CompilerParams(
            dimension_semantics=("parallel",),
            vmem_limit_bytes=64 * 1024 * 1024,
        ),
    )(xcat, w1p, b1p, w2p, b2p)

    # Strip batch padding and the lane-padded output columns.
    return out[:B, :1]


def init_params(key, res_size, att_size, iou_size, ndh):
    """Matches weights_init: W ~ N(0, 0.02), b = 0 (stored as [in, out])."""
    k1, k2 = jax.random.split(key, 2)
    std = 0.02
    k_in = res_size + att_size + iou_size
    return {
        "w1": jax.random.normal(k1, (k_in, ndh), jnp.float32) * std,
        "b1": jnp.zeros((ndh,), jnp.float32),
        "w2": jax.random.normal(k2, (ndh, 1), jnp.float32) * std,
        "b2": jnp.zeros((1,), jnp.float32),
    }


def _reference_forward(x, att, iou, params):
    """Plain f32 JAX reference mirroring the PyTorch forward."""
    h = jnp.concatenate((x, att, iou), axis=1)
    h = h @ params["w1"] + params["b1"]
    h = jnp.where(h > 0, h, 0.2 * h)
    return h @ params["w2"] + params["b2"]


if __name__ == "__main__":
    # Small shapes implied by the module: opt.resSize, opt.attSize,
    # opt.iou_information_size, opt.ndh.
    B, res_size, att_size, iou_size, ndh = 8, 32, 16, 4, 64

    key = jax.random.PRNGKey(0)
    kx, ka, ki, kp = jax.random.split(key, 4)

    x = jax.random.normal(kx, (B, res_size), jnp.float32)
    att = jax.random.normal(ka, (B, att_size), jnp.float32)
    iou = jax.random.normal(ki, (B, iou_size), jnp.float32)
    params = init_params(kp, res_size, att_size, iou_size, ndh)

    out = mlp_critic_iou_forward(x, att, iou, params)
    out = jax.block_until_ready(out)

    ref = _reference_forward(x, att, iou, params)
    assert out.shape == (B, 1)
    # bf16 MXU operands with f32 accumulation -> loosened tolerance vs f32 ref.
    assert jnp.allclose(out, ref, atol=2e-2, rtol=2e-2), (
        float(jnp.max(jnp.abs(out - ref))))

    print("KERNEL_OK")
</pallas_src>

<mosaic_0001>
module attributes {stable_mosaic.version = 11 : i64} {
  func.func @_mlp_critic_iou_kernel(%arg0: i32, %arg1: memref<16x128xbf16, #tpu.memory_space<vmem>>, %arg2: memref<128x128xbf16, #tpu.memory_space<vmem>>, %arg3: memref<1x128xf32, #tpu.memory_space<vmem>>, %arg4: memref<128x128xbf16, #tpu.memory_space<vmem>>, %arg5: memref<1x128xf32, #tpu.memory_space<vmem>>, %arg6: memref<16x128xf32, #tpu.memory_space<vmem>>) attributes {dimension_semantics = [#tpu.dimension_semantics<parallel>], iteration_bounds = array<i64: 1>, scalar_prefetch = 0 : i64, scratch_operands = 0 : i64, tpu.core_type = #tpu.core_type<tc>, window_params = [{transform_indices = @transform_0, window_bounds = array<i64: 16, 128>}, {pipeline_mode = #tpu.pipeline_mode<synchronous>, transform_indices = @transform_1, window_bounds = array<i64: 128, 128>}, {pipeline_mode = #tpu.pipeline_mode<synchronous>, transform_indices = @transform_2, window_bounds = array<i64: 1, 128>}, {pipeline_mode = #tpu.pipeline_mode<synchronous>, transform_indices = @transform_3, window_bounds = array<i64: 128, 128>}, {pipeline_mode = #tpu.pipeline_mode<synchronous>, transform_indices = @transform_4, window_bounds = array<i64: 1, 128>}, {transform_indices = @transform_5, window_bounds = array<i64: 16, 128>}]} {
    %c0 = arith.constant 0 : index
    %c0_0 = arith.constant 0 : index
    %0 = vector.load %arg1[%c0, %c0_0] : memref<16x128xbf16, #tpu.memory_space<vmem>>, vector<16x128xbf16>
    %c0_1 = arith.constant 0 : index
    %c0_2 = arith.constant 0 : index
    %1 = vector.load %arg2[%c0_1, %c0_2] : memref<128x128xbf16, #tpu.memory_space<vmem>>, vector<128x128xbf16>
    %cst = arith.constant dense<0.000000e+00> : vector<16x128xf32>
    %2 = tpu.matmul %0, %1, %cst {dimension_numbers = #tpu.dot_dimension_numbers<[1], [0], [0], [1], [0, 0, 1, 1], [], []>} : vector<16x128xbf16>, vector<128x128xbf16>, vector<16x128xf32> -> vector<16x128xf32>
    %c0_3 = arith.constant 0 : index
    %c0_4 = arith.constant 0 : index
    %3 = vector.load %arg3[%c0_3, %c0_4] : memref<1x128xf32, #tpu.memory_space<vmem>>, vector<1x128xf32>
    %4 = vector.broadcast %3 : vector<1x128xf32> to vector<16x128xf32>
    %5 = arith.addf %2, %4 : vector<16x128xf32>
    %cst_5 = arith.constant 0.000000e+00 : f32
    %6 = vector.broadcast %cst_5 : f32 to vector<16x128xf32>
    %7 = arith.cmpf ogt, %5, %6 : vector<16x128xf32>
    %cst_6 = arith.constant 2.000000e-01 : f32
    %8 = vector.broadcast %cst_6 : f32 to vector<16x128xf32>
    %9 = arith.mulf %8, %5 : vector<16x128xf32>
    %10 = arith.select %7, %5, %9 : vector<16x128xi1>, vector<16x128xf32>
    %11 = arith.truncf %10 : vector<16x128xf32> to vector<16x128xbf16>
    %c0_7 = arith.constant 0 : index
    %c0_8 = arith.constant 0 : index
    %12 = vector.load %arg4[%c0_7, %c0_8] : memref<128x128xbf16, #tpu.memory_space<vmem>>, vector<128x128xbf16>
    %cst_9 = arith.constant dense<0.000000e+00> : vector<16x128xf32>
    %13 = tpu.matmul %11, %12, %cst_9 {dimension_numbers = #tpu.dot_dimension_numbers<[1], [0], [0], [1], [0, 0, 1, 1], [], []>} : vector<16x128xbf16>, vector<128x128xbf16>, vector<16x128xf32> -> vector<16x128xf32>
    %c0_10 = arith.constant 0 : index
    %c0_11 = arith.constant 0 : index
    %14 = vector.load %arg5[%c0_10, %c0_11] : memref<1x128xf32, #tpu.memory_space<vmem>>, vector<1x128xf32>
    %15 = vector.broadcast %14 : vector<1x128xf32> to vector<16x128xf32>
    %16 = arith.addf %13, %15 : vector<16x128xf32>
    %c0_12 = arith.constant 0 : index
    %c0_13 = arith.constant 0 : index
    %17 = vector.load %arg6[%c0_12, %c0_13] : memref<16x128xf32, #tpu.memory_space<vmem>>, vector<16x128xf32>
    tpu.vector_store %arg6[%c0_12, %c0_13], %16 {strides = array<i32>} : memref<16x128xf32, #tpu.memory_space<vmem>>, vector<16x128xf32>,
    return
  }
  func.func @transform_0(%arg0: i32) -> (i32, i32) {
    %c0_i32 = arith.constant 0 : i32
    %c0_i32_0 = arith.constant 0 : i32
    return %arg0, %c0_i32 : i32, i32
  }
  func.func @transform_1(%arg0: i32) -> (i32, i32) {
    %c0_i32 = arith.constant 0 : i32
    %c0_i32_0 = arith.constant 0 : i32
    %c0_i32_1 = arith.constant 0 : i32
    return %c0_i32, %c0_i32_0 : i32, i32
  }
  func.func @transform_2(%arg0: i32) -> (i32, i32) {
    %c0_i32 = arith.constant 0 : i32
    %c0_i32_0 = arith.constant 0 : i32
    %c0_i32_1 = arith.constant 0 : i32
    return %c0_i32, %c0_i32_0 : i32, i32
  }
  func.func @transform_3(%arg0: i32) -> (i32, i32) {
    %c0_i32 = arith.constant 0 : i32
    %c0_i32_0 = arith.constant 0 : i32
    %c0_i32_1 = arith.constant 0 : i32
    return %c0_i32, %c0_i32_0 : i32, i32
  }
  func.func @transform_4(%arg0: i32) -> (i32, i32) {
    %c0_i32 = arith.constant 0 : i32
    %c0_i32_0 = arith.constant 0 : i32
    %c0_i32_1 = arith.constant 0 : i32
    return %c0_i32, %c0_i32_0 : i32, i32
  }
  func.func @transform_5(%arg0: i32) -> (i32, i32) {
    %c0_i32 = arith.constant 0 : i32
    %c0_i32_0 = arith.constant 0 : i32
    return %arg0, %c0_i32 : i32, i32
  }
}

</mosaic_0001>

<llo_original>
// kernel: tpu_custom_call.1
$region0: #{tpu_custom_call.1}
  #allocation0 [shape = 'u32[]', space=smem, size = 0x4, offset = 0x4, fixed_abs, tag = 'smem constant byte address 0x4 - core index']
  #allocation1 [shape = 'u32[144,128]{1,0:T(1,128)}', space=vmem, size = 0x12000, scoped, tag = 'internal scratch']
  %s0 = inlined_call_operand.hbm [shape: bf16[16,128], index: 0, kind: input, shape index: {}]
  %s1 = inlined_call_operand.hbm [shape: bf16[128,128], index: 1, kind: input, shape index: {}]
  %s2 = inlined_call_operand.vmem [shape: f32[1,128], index: 2, kind: input, shape index: {}]
  %s3 = inlined_call_operand.hbm [shape: bf16[128,128], index: 3, kind: input, shape index: {}]
  %s4 = inlined_call_operand.vmem [shape: f32[1,128], index: 4, kind: input, shape index: {}]
  %s5 = inlined_call_operand.hbm [shape: f32[16,128], index: 5, kind: output, shape index: {}]
  %s6 = sld [smem:[#allocation0]]
  $region42: #{tpu_custom_call.1} parent=0
    _
  %s8 = ssub.s32 1, %s6
  %s9 = scalar_select 0, %s8, %s6
  $region1: #{tpu_custom_call.1} parent=0
    #allocation2 [shape = 'u8[4096]{0}', space=vmem, size = 0x1000, scoped, tag = 'input window, operand 0, single buffered']
    #allocation3 [shape = 's32[1]{0}', space=sflag, size = 0x4, scoped, tag = 'scoped memory for tpu_custom_call.1']
    #allocation4 [shape = 's32[1]{0}', space=sflag, size = 0x4, scoped, tag = 'scoped memory for tpu_custom_call.1']
    #allocation5 [shape = 'u8[32768]{0}', space=vmem, size = 0x8000, scoped, tag = 'input window, operand 1, single buffered']
    #allocation6 [shape = 's32[1]{0}', space=sflag, size = 0x4, scoped, tag = 'scoped memory for tpu_custom_call.1']
    #allocation7 [shape = 'u8[32768]{0}', space=vmem, size = 0x8000, scoped, tag = 'input window, operand 3, single buffered']
    #allocation8 [shape = 'u8[8192]{0}', space=vmem, size = 0x2000, scoped, tag = 'output window, operand 0, single buffered']
    %10 = vsyncpa [#allocation3], 0
    %11 = vsyncpa [#allocation6], 0
    %12 = vsyncpa [#allocation4], 0
    // Predicated region
    $region2: #{tpu_custom_call.1} parent=1 // pred_check
      _
    $region3: #{tpu_custom_call.1} parent=1 // pred_check_branch
      %14 = sbr.rel (0) target = $region5
    $region4: #{tpu_custom_call.1} parent=1 // pred_region
      %s16 = ssub.s32 128, 128
      %17 = vsyncadd [#allocation3], %s16
      %s18 = sshll.u32 [#allocation2], 4
      %s19 = int_to_ptr.vmem [resolvable:$true] %s18
      %24 = dma.hbm_to_vmem [thread:$0]  %s0, 128, %s19, [#allocation3], 64, 64, 4
    $region5: #{tpu_custom_call.1} parent=1 // pred_fallthru
      _
    // Predicated region
    $region6: #{tpu_custom_call.1} parent=1 // pred_check
      _
    $region7: #{tpu_custom_call.1} parent=1 // pred_check_branch
      %26 = sbr.rel (0) target = $region9
    $region8: #{tpu_custom_call.1} parent=1 // pred_region
      %s28 = ssub.s32 1024, 1024
      %29 = vsyncadd [#allocation6], %s28
      %s30 = sshll.u32 [#allocation5], 4
      %s31 = int_to_ptr.vmem [resolvable:$true] %s30
      %36 = dma.hbm_to_vmem [thread:$0]  %s1, 1024, %s31, [#allocation6], 64, 64, 4
    $region9: #{tpu_custom_call.1} parent=1 // pred_fallthru
      _
    // Predicated region
    $region10: #{tpu_custom_call.1} parent=1 // pred_check
      _
    $region11: #{tpu_custom_call.1} parent=1 // pred_check_branch
      %38 = sbr.rel (0) target = $region13
    $region12: #{tpu_custom_call.1} parent=1 // pred_region
      _
    $region13: #{tpu_custom_call.1} parent=1 // pred_fallthru
      _
    // Predicated region
    $region14: #{tpu_custom_call.1} parent=1 // pred_check
      _
    $region15: #{tpu_custom_call.1} parent=1 // pred_check_branch
      %40 = sbr.rel (0) target = $region17
    $region16: #{tpu_custom_call.1} parent=1 // pred_region
      %s42 = ssub.s32 1024, 1024
      %43 = vsyncadd [#allocation6], %s42
      %s44 = sshll.u32 [#allocation7], 4
      %s45 = int_to_ptr.vmem [resolvable:$true] %s44
      %50 = dma.hbm_to_vmem [thread:$0]  %s3, 1024, %s45, [#allocation6], 64, 64, 4
    $region17: #{tpu_custom_call.1} parent=1 // pred_fallthru
      _
    // Predicated region
    $region18: #{tpu_custom_call.1} parent=1 // pred_check
      _
    $region19: #{tpu_custom_call.1} parent=1 // pred_check_branch
      %52 = sbr.rel (0) target = $region21
    $region20: #{tpu_custom_call.1} parent=1 // pred_region
      _
    $region21: #{tpu_custom_call.1} parent=1 // pred_fallthru
      _
    // Predicated region
    $region22: #{tpu_custom_call.1} parent=1 // pred_check
      _
    $region23: #{tpu_custom_call.1} parent=1 // pred_check_branch
      %54 = sbr.rel (0) target = $region25
    $region24: #{tpu_custom_call.1} parent=1 // pred_region
      %55 = dma.done [#allocation3], 128
    $region25: #{tpu_custom_call.1} parent=1 // pred_fallthru
      _
    // Predicated region
    $region26: #{tpu_custom_call.1} parent=1 // pred_check
      _
    $region27: #{tpu_custom_call.1} parent=1 // pred_check_branch
      %57 = sbr.rel (0) target = $region29
    $region28: #{tpu_custom_call.1} parent=1 // pred_region
      %58 = dma.done [#allocation6], 1024
    $region29: #{tpu_custom_call.1} parent=1 // pred_fallthru
      _
    // Predicated region
    $region30: #{tpu_custom_call.1} parent=1 // pred_check
      _
    $region31: #{tpu_custom_call.1} parent=1 // pred_check_branch
      %60 = sbr.rel (0) target = $region33
    $region32: #{tpu_custom_call.1} parent=1 // pred_region
      %61 = dma.done [#allocation6], 1024
    $region33: #{tpu_custom_call.1} parent=1 // pred_fallthru
      _
    %v63 = vld [vmem:[#allocation2] sm:$0xf]
    %v64 = vld [vmem:[#allocation2 + $0x4] sm:$0xf]
    %v65 = vld [vmem:[#allocation5] sm:$0xf]
    %v66 = vld [vmem:[#allocation5 + $0x4] sm:$0xf]
    %v67 = vld [vmem:[#allocation5 + $0x8] sm:$0xf]
    %v68 = vld [vmem:[#allocation5 + $0xc] sm:$0xf]
    %v69 = vld [vmem:[#allocation5 + $0x10] sm:$0xf]
    %v70 = vld [vmem:[#allocation5 + $0x14] sm:$0xf]
    %v71 = vld [vmem:[#allocation5 + $0x18] sm:$0xf]
    %v72 = vld [vmem:[#allocation5 + $0x1c] sm:$0xf]
    %v73 = vld [vmem:[#allocation5 + $0x20] sm:$0xf]
    %v74 = vld [vmem:[#allocation5 + $0x24] sm:$0xf]
    %v75 = vld [vmem:[#allocation5 + $0x28] sm:$0xf]
    %v76 = vld [vmem:[#allocation5 + $0x2c] sm:$0xf]
    %v77 = vld [vmem:[#allocation5 + $0x30] sm:$0xf]
    %v78 = vld [vmem:[#allocation5 + $0x34] sm:$0xf]
    %v79 = vld [vmem:[#allocation5 + $0x38] sm:$0xf]
    %v80 = vld [vmem:[#allocation5 + $0x3c] sm:$0xf]
    %v81 = vld [vmem:[%s2] sm:$0x1]
    %v83 = vlaneseq
    %v84 = vshrl.u32 %v83, 7
    %v85 = vsub.s32 0, %v84
    %v86 = vrot.slane %v81, %v85
    %v90 = vunpack.c.l.b16 %v63
    %v91 = vunpack.c.l.b16 %v64
    %v92 = vpack.c.b16 %v91, %v90
    %v110 = vunpack.c.l.b16 %v65
    %v111 = vunpack.c.l.b16 %v66
    %v112 = vunpack.c.l.b16 %v67
    %v113 = vunpack.c.l.b16 %v68
    %v114 = vunpack.c.l.b16 %v69
    %v115 = vunpack.c.l.b16 %v70
    %v116 = vunpack.c.l.b16 %v71
    %v117 = vunpack.c.l.b16 %v72
    %v118 = vunpack.c.l.b16 %v73
    %v119 = vunpack.c.l.b16 %v74
    %v120 = vunpack.c.l.b16 %v75
    %v121 = vunpack.c.l.b16 %v76
    %v122 = vunpack.c.l.b16 %v77
    %v123 = vunpack.c.l.b16 %v78
    %v124 = vunpack.c.l.b16 %v79
    %v125 = vunpack.c.l.b16 %v80
    %v126 = vpack.c.b16 %v111, %v110
    %v127 = vpack.c.b16 %v113, %v112
    %v128 = vpack.c.b16 %v115, %v114
    %v129 = vpack.c.b16 %v117, %v116
    %v130 = vpack.c.b16 %v119, %v118
    %v131 = vpack.c.b16 %v121, %v120
    %v132 = vpack.c.b16 %v123, %v122
    %v133 = vpack.c.b16 %v125, %v124
    %142 = vmatprep.subr.bf16.mxu0 0
    %143 = vmatpush1.bf16.msra.mxu0 %v133
    %144 = vmatprep.subr.bf16.mxu0 0
    %145 = vmatpush1.bf16.msra.mxu0 %v132
    %146 = vmatprep.subr.bf16.mxu0 0
    %147 = vmatpush1.bf16.msra.mxu0 %v131
    %148 = vmatprep.subr.bf16.mxu0 0
    %149 = vmatpush1.bf16.msra.mxu0 %v130
    %150 = vmatprep.subr.bf16.mxu0 0
    %151 = vmatpush1.bf16.msra.mxu0 %v129
    %152 = vmatprep.subr.bf16.mxu0 0
    %153 = vmatpush1.bf16.msra.mxu0 %v128
    %154 = vmatprep.subr.bf16.mxu0 0
    %155 = vmatpush1.bf16.msra.mxu0 %v127
    %156 = vmatprep.subr.bf16.mxu0 0
    %157 = vmatpush1.bf16.msra.mxu0 %v126
    %158 = vmatprep.subr.bf16.mxu0 0
    %159 = vmatpush2.bf16.msra.mxu0 0
    %160 = vmatprep.subr.bf16.mxu0 0
    %161 = vmatpush2.bf16.msra.mxu0 0
    %162 = vmatprep.subr.bf16.mxu0 0
    %163 = vmatpush2.bf16.msra.mxu0 0
    %164 = vmatprep.subr.bf16.mxu0 0
    %165 = vmatpush2.bf16.msra.mxu0 0
    %166 = vmatprep.subr.bf16.mxu0 0
    %167 = vmatpush2.bf16.msra.mxu0 0
    %168 = vmatprep.subr.bf16.mxu0 0
    %169 = vmatpush2.bf16.msra.mxu0 0
    %170 = vmatprep.subr.bf16.mxu0 0
    %171 = vmatpush2.bf16.msra.mxu0 0
    %172 = vmatprep.subr.bf16.mxu0 0
    %173 = vmatpush2.bf16.msra.mxu0 0
    %174 = vmatprep.mubr.bf16.mxu0 0
    %175 = vmatmul.mubr.bf16.gmra.mxu0 %v92
    %v176 = vpop.f32.mrf.mxu0
    %v177 = vadd.f32 %v86, %v176
    %v178 = vpop.f32.mrf.mxu0
    %v179 = vpop.f32.mrf.mxu0
    %v180 = vadd.f32 %v86, %v179
    %v181 = vpop.f32.mrf.mxu0
    %182 = vdwg.mxu0
    %vm183 = vcmp.gt.f32.partialorder %v177, 0.0
    %vm184 = vcmp.gt.f32.partialorder %v180, 0.0
    %v185 = vmul.f32 %v177, 0.2
    %v186 = vmul.f32 %v180, 0.2
    %v187 = vsel %vm183, %v177, %v185
    %v188 = vsel %vm184, %v180, %v186
    %v189 = vpack.c.bf16 %v188, %v187
    %v190 = vld [vmem:[#allocation7] sm:$0xf]
    %v191 = vld [vmem:[#allocation7 + $0x4] sm:$0xf]
    %v192 = vld [vmem:[#allocation7 + $0x8] sm:$0xf]
    %v193 = vld [vmem:[#allocation7 + $0xc] sm:$0xf]
    %v194 = vld [vmem:[#allocation7 + $0x10] sm:$0xf]
    %v195 = vld [vmem:[#allocation7 + $0x14] sm:$0xf]
    %v196 = vld [vmem:[#allocation7 + $0x18] sm:$0xf]
    %v197 = vld [vmem:[#allocation7 + $0x1c] sm:$0xf]
    %v198 = vld [vmem:[#allocation7 + $0x20] sm:$0xf]
    %v199 = vld [vmem:[#allocation7 + $0x24] sm:$0xf]
    %v200 = vld [vmem:[#allocation7 + $0x28] sm:$0xf]
    %v201 = vld [vmem:[#allocation7 + $0x2c] sm:$0xf]
    %v202 = vld [vmem:[#allocation7 + $0x30] sm:$0xf]
    %v203 = vld [vmem:[#allocation7 + $0x34] sm:$0xf]
    %v204 = vld [vmem:[#allocation7 + $0x38] sm:$0xf]
    %v205 = vld [vmem:[#allocation7 + $0x3c] sm:$0xf]
    %v206 = vld [vmem:[%s4] sm:$0x1]
    %v208 = vlaneseq
    %v209 = vshrl.u32 %v208, 7
    %v210 = vsub.s32 0, %v209
    %v211 = vrot.slane %v206, %v210
    %v229 = vunpack.c.l.b16 %v190
    %v230 = vunpack.c.l.b16 %v191
    %v231 = vunpack.c.l.b16 %v192
    %v232 = vunpack.c.l.b16 %v193
    %v233 = vunpack.c.l.b16 %v194
    %v234 = vunpack.c.l.b16 %v195
    %v235 = vunpack.c.l.b16 %v196
    %v236 = vunpack.c.l.b16 %v197
    %v237 = vunpack.c.l.b16 %v198
    %v238 = vunpack.c.l.b16 %v199
    %v239 = vunpack.c.l.b16 %v200
    %v240 = vunpack.c.l.b16 %v201
    %v241 = vunpack.c.l.b16 %v202
    %v242 = vunpack.c.l.b16 %v203
    %v243 = vunpack.c.l.b16 %v204
    %v244 = vunpack.c.l.b16 %v205
    %v245 = vpack.c.b16 %v230, %v229
    %v246 = vpack.c.b16 %v232, %v231
    %v247 = vpack.c.b16 %v234, %v233
    %v248 = vpack.c.b16 %v236, %v235
    %v249 = vpack.c.b16 %v238, %v237
    %v250 = vpack.c.b16 %v240, %v239
    %v251 = vpack.c.b16 %v242, %v241
    %v252 = vpack.c.b16 %v244, %v243
    %261 = vmatprep.subr.bf16.mxu0 0
    %262 = vmatpush1.bf16.msra.mxu0 %v252
    %263 = vmatprep.subr.bf16.mxu0 0
    %264 = vmatpush1.bf16.msra.mxu0 %v251
    %265 = vmatprep.subr.bf16.mxu0 0
    %266 = vmatpush1.bf16.msra.mxu0 %v250
    %267 = vmatprep.subr.bf16.mxu0 0
    %268 = vmatpush1.bf16.msra.mxu0 %v249
    %269 = vmatprep.subr.bf16.mxu0 0
    %270 = vmatpush1.bf16.msra.mxu0 %v248
    %271 = vmatprep.subr.bf16.mxu0 0
    %272 = vmatpush1.bf16.msra.mxu0 %v247
    %273 = vmatprep.subr.bf16.mxu0 0
    %274 = vmatpush1.bf16.msra.mxu0 %v246
    %275 = vmatprep.subr.bf16.mxu0 0
    %276 = vmatpush1.bf16.msra.mxu0 %v245
    %277 = vmatprep.subr.bf16.mxu0 0
    %278 = vmatpush2.bf16.msra.mxu0 0
    %279 = vmatprep.subr.bf16.mxu0 0
    %280 = vmatpush2.bf16.msra.mxu0 0
    %281 = vmatprep.subr.bf16.mxu0 0
    %282 = vmatpush2.bf16.msra.mxu0 0
    %283 = vmatprep.subr.bf16.mxu0 0
    %284 = vmatpush2.bf16.msra.mxu0 0
    %285 = vmatprep.subr.bf16.mxu0 0
    %286 = vmatpush2.bf16.msra.mxu0 0
    %287 = vmatprep.subr.bf16.mxu0 0
    %288 = vmatpush2.bf16.msra.mxu0 0
    %289 = vmatprep.subr.bf16.mxu0 0
    %290 = vmatpush2.bf16.msra.mxu0 0
    %291 = vmatprep.subr.bf16.mxu0 0
    %292 = vmatpush2.bf16.msra.mxu0 0
    %293 = vmatprep.mubr.bf16.mxu0 0
    %294 = vmatmul.mubr.bf16.gmra.mxu0 %v189
    %v295 = vpop.f32.mrf.mxu0
    %v296 = vadd.f32 %v211, %v295
    %v297 = vpop.f32.mrf.mxu0
    %v298 = vpop.f32.mrf.mxu0
    %v299 = vadd.f32 %v211, %v298
    %v300 = vpop.f32.mrf.mxu0
    %301 = vdwg.mxu0
    %302 = vst [vmem:[#allocation8] sm:$0xff] %v296
    %303 = vst [vmem:[#allocation8 + $0x8] sm:$0xff] %v299
    // Predicated region
    $region34: #{tpu_custom_call.1} parent=1 // pred_check
      _
    $region35: #{tpu_custom_call.1} parent=1 // pred_check_branch
      %305 = sbr.rel (0) target = $region37
    $region36: #{tpu_custom_call.1} parent=1 // pred_region
      %s307 = ssub.s32 256, 256
      %308 = vsyncadd [#allocation4], %s307
      %s309 = sshll.u32 [#allocation8], 4
      %s310 = int_to_ptr.vmem [resolvable:$true] %s309
      %315 = dma.vmem_to_hbm [thread:$0]  %s310, 256, %s5, [#allocation4], 128, 128, 8
    $region37: #{tpu_custom_call.1} parent=1 // pred_fallthru
      _
    // Predicated region
    $region38: #{tpu_custom_call.1} parent=1 // pred_check
      _
    $region39: #{tpu_custom_call.1} parent=1 // pred_check_branch
      %317 = sbr.rel (0) target = $region41
    $region40: #{tpu_custom_call.1} parent=1 // pred_region
      %318 = dma.done [#allocation4], 256
    $region41: #{tpu_custom_call.1} parent=1 // pred_fallthru
      _
    %319 = vsyncpa [#allocation3], 1
    %320 = vsyncpa [#allocation6], 1
    %321 = vsyncpa [#allocation4], 1

</llo_original>
